<compile_context>
chip_gen: v6e
topology: v6e:2x2x1
jax: 0.10.0
libtpu: 0.0.40
codegen_flags: <defaults>
</compile_context>

<pallas_src>
import jax
import jax.numpy as jnp
from jax import lax
from jax.experimental import pallas as pl
from jax.experimental.pallas import tpu as pltpu


# ----------------------------------------------------------------------------- kernel
def _oab_kernel(x_ref, k_ref, v_ref,
                wp1, bp1, wp2, bp2,      # f_pixel (2x folded conv+BN+ReLU; K**-0.5 folded into layer 2)
                wu, bu,                  # f_up    (folded conv+BN+ReLU)
                o_ref):
    cdt = x_ref.dtype                    # matmul operand dtype (bf16 stays bf16)
    x = x_ref[0]                         # (C, T)  current token tile, channel-first
    k = k_ref[0]                         # (K, M)  precomputed key   = f_object(proxy)
    v = v_ref[0]                         # (K, M)  precomputed value = f_down(proxy)

    def lin_relu(w_ref, t, b_ref):
        # relu(W @ t + b): canonical (Cout,Cin)x(Cin,T); f32 accumulate.
        y = lax.dot_general(w_ref[...], t, (((1,), (0,)), ((), ())),
                            preferred_element_type=jnp.float32)
        return jnp.maximum(y + b_ref[...].astype(jnp.float32), 0.0)

    # query = f_pixel(x) -> (K, T)  (pre-scaled by key_channels**-0.5 via wp2/bp2)
    q = lin_relu(wp2, lin_relu(wp1, x, bp1).astype(cdt), bp2).astype(cdt)

    # sim[m, t] = <key_m, query_t>  -> (M, T); contract over K.  Only the tiny
    # (K, M) key ever needs a relayout; T stays on the lane axis throughout.
    sim = lax.dot_general(k, q, (((0,), (0,)), ((), ())),
                          preferred_element_type=jnp.float32)
    # softmax over the object-region axis M (sublane reduction of a small axis)
    sim = sim - jnp.max(sim, axis=0, keepdims=True)
    e = jnp.exp(sim)
    sm = e * pl.reciprocal(jnp.sum(e, axis=0, keepdims=True), approx=True)

    # context -> (K, T): canonical (K,M)x(M,T), no relayout of T-sized tensors.
    ctx = lax.dot_general(v, sm.astype(cdt), (((1,), (0,)), ((), ())),
                          preferred_element_type=jnp.float32).astype(cdt)

    # f_up(context) -> (C, T): canonical (C,K)x(K,T), emitted channel-first.
    out = lax.dot_general(wu[...], ctx, (((1,), (0,)), ((), ())),
                          preferred_element_type=jnp.float32)
    o_ref[0] = jnp.maximum(out + bu[...].astype(jnp.float32), 0.0).astype(o_ref.dtype)


# ----------------------------------------------------------------------------- config helpers
def _vmem_budget():
    """(vmem_limit_bytes, max_tile_hw) chosen per TPU generation."""
    phys = 64 * 1024 * 1024
    try:
        phys = int(getattr(pltpu.get_tpu_info(), "vmem_capacity_bytes", phys))
    except Exception:
        pass
    if phys >= 100 * 1024 * 1024:
        # v5e / v6e: 128 MiB VMEM -> big tiles amortize per-grid-step overhead.
        return 100 * 1024 * 1024, 4096
    # v7x-class (64 MiB physical): leave headroom for Mosaic internal scratch,
    # double-buffered x/out tiles and the f32 intermediates.
    limit = max(32 * 1024 * 1024, min(52 * 1024 * 1024, phys - 12 * 1024 * 1024))
    return limit, 2048


def _choose_tile(hw, max_tile):
    """Pick a lane-friendly token tile (multiple of 128) and the padded HW it divides."""
    if hw <= max_tile:
        return hw, hw                              # single full-extent block, no padding
    best_t, best_pad = None, None
    for t in range(max_tile - max_tile % 128, 127, -128):
        pad = (-hw) % t
        if best_pad is None or pad < best_pad:
            best_t, best_pad = t, pad
        if pad == 0:
            break
    return best_t, hw + best_pad


# ----------------------------------------------------------------------------- wrapper
def object_attention_block(x_nchw, proxy_nchw, params, key_channels, *, tile_hw=None):
    """x: (N, C, H, W); proxy: (N, C, Hp, Wp). Returns (N, C, H, W)."""
    N, C, H, W = x_nchw.shape
    _, Cp, Hp, Wp = proxy_nchw.shape
    HW, M = H * W, Hp * Wp
    cdt = x_nchw.dtype

    # Channel-first token layout via reshape only -- no HBM transpose passes.
    x_tok = x_nchw.reshape(N, C, HW)
    p_tok = proxy_nchw.reshape(N, Cp, M).astype(jnp.float32)

    (wp1, bp1, wp2, bp2, wo1, bo1, wo2, bo2, wd, bd, wu, bu) = params

    # ---- hoisted per-batch key/value projections over the tiny proxy (M regions) ----
    def lr(w, t, b):
        y = (jnp.einsum("oc,ncm->nom", w.astype(jnp.float32), t)
             + b.astype(jnp.float32)[None])
        return jnp.maximum(y, 0.0)

    k_tok = lr(wo2, lr(wo1, p_tok, bo1), bo2).astype(cdt)     # (N, K, M)
    v_tok = lr(wd, p_tok, bd).astype(cdt)                     # (N, K, M)
    K = k_tok.shape[1]

    # ---- fold K**-0.5 into f_pixel layer 2 (positive scale commutes with ReLU);
    #      cast weights to the activation dtype (native bf16 MXU when x is bf16),
    #      keep biases f32 (added onto the f32 accumulator anyway).
    s = float(key_channels) ** -0.5
    w_args = (wp1.astype(cdt), bp1.astype(jnp.float32),
              (wp2.astype(jnp.float32) * s).astype(cdt),
              (bp2.astype(jnp.float32) * s),
              wu.astype(cdt), bu.astype(jnp.float32))

    # ---- generation-aware tile / VMEM budget; pad HW to a lane-dense multiple ----
    vmem_limit, max_tile = _vmem_budget()
    if tile_hw is None:
        t_hw, hw_pad = _choose_tile(HW, max_tile)
    else:
        t_hw = int(tile_hw)
        hw_pad = -(-HW // t_hw) * t_hw
    if hw_pad != HW:
        x_tok = jnp.pad(x_tok, ((0, 0), (0, 0), (0, hw_pad - HW)))
    n_tiles = hw_pad // t_hw

    # Weights/biases: constant index_map (fetched once); after the k/v hoist the
    # remaining weight set is small enough that default buffering is fine.
    def wspec(a):
        nd = a.ndim
        return pl.BlockSpec(a.shape, lambda b, t, nd=nd: (0,) * nd)

    out_tok = pl.pallas_call(
        _oab_kernel,
        out_shape=jax.ShapeDtypeStruct((N, C, hw_pad), cdt),
        grid_spec=pltpu.PrefetchScalarGridSpec(
            num_scalar_prefetch=0,
            grid=(N, n_tiles),
            in_specs=[
                pl.BlockSpec((1, C, t_hw), lambda b, t: (b, 0, t)),   # x tile
                pl.BlockSpec((1, K, M), lambda b, t: (b, 0, 0)),      # key
                pl.BlockSpec((1, K, M), lambda b, t: (b, 0, 0)),      # value
            ] + [wspec(a) for a in w_args],
            out_specs=pl.BlockSpec((1, C, t_hw), lambda b, t: (b, 0, t)),
        ),
        compiler_params=pltpu.CompilerParams(
            dimension_semantics=("parallel", "parallel"),
            vmem_limit_bytes=vmem_limit,
        ),
    )(x_tok, k_tok, v_tok, *w_args)

    if hw_pad != HW:
        out_tok = out_tok[:, :, :HW]
    return out_tok.reshape(N, C, H, W)


# ----------------------------------------------------------------------------- params
def _fold_conv_bn(w, gamma, beta, mean, var, eps=1e-5, dtype=jnp.float32):
    """Fold Conv2d(1x1, bias=False) + BatchNorm2d(eval) into (W_eff, b_eff).

    w: (Cout, Cin). For a channel-first token matrix t (Cin, T):
    relu(W_eff @ t + b_eff) == relu(BN(conv(t))).
    """
    s = gamma / jnp.sqrt(var + eps)                     # (Cout,)
    w_eff = (w * s[:, None]).astype(dtype)              # (Cout, Cin)
    b_eff = ((beta - mean * s)[:, None]).astype(dtype)  # (Cout, 1)
    return w_eff, b_eff


def _make_params(key, in_channels, key_channels, dtype=jnp.float32):
    C, K = in_channels, key_channels
    keys = jax.random.split(key, 30)                    # 6 conv+BN blocks x 5 keys
    ki = iter(range(30))

    def conv_bn(cin, cout):
        w = 0.1 * jax.random.normal(keys[next(ki)], (cout, cin), jnp.float32)
        gamma = 1.0 + 0.05 * jax.random.normal(keys[next(ki)], (cout,), jnp.float32)
        beta = 0.05 * jax.random.normal(keys[next(ki)], (cout,), jnp.float32)
        mean = 0.05 * jax.random.normal(keys[next(ki)], (cout,), jnp.float32)
        var = 1.0 + 0.1 * jax.nn.softplus(
            jax.random.normal(keys[next(ki)], (cout,), jnp.float32))
        return _fold_conv_bn(w, gamma, beta, mean, var, dtype=dtype)

    wp1, bp1 = conv_bn(C, K)   # f_pixel[0]
    wp2, bp2 = conv_bn(K, K)   # f_pixel[1]
    wo1, bo1 = conv_bn(C, K)   # f_object[0]
    wo2, bo2 = conv_bn(K, K)   # f_object[1]
    wd, bd = conv_bn(C, K)     # f_down
    wu, bu = conv_bn(K, C)     # f_up
    return (wp1, bp1, wp2, bp2, wo1, bo1, wo2, bo2, wd, bd, wu, bu)


# ----------------------------------------------------------------------------- reference
def _reference(x_nchw, proxy_nchw, params, key_channels):
    """Pure-JAX f32 reference mirroring the PyTorch forward (scale=1)."""
    N, C, H, W = x_nchw.shape
    _, _, Hp, Wp = proxy_nchw.shape
    HW, M = H * W, Hp * Wp
    (wp1, bp1, wp2, bp2, wo1, bo1, wo2, bo2, wd, bd, wu, bu) = params

    x = x_nchw.reshape(N, C, HW).astype(jnp.float32)
    p = proxy_nchw.reshape(N, C, M).astype(jnp.float32)

    def lr(w, t, b):
        return jnp.maximum(
            jnp.einsum("oc,nct->not", w.astype(jnp.float32), t)
            + b.astype(jnp.float32)[None], 0.0)

    q = lr(wp2, lr(wp1, x, bp1), bp2)                       # (N, K, HW)
    k = lr(wo2, lr(wo1, p, bo1), bo2)                       # (N, K, M)
    v = lr(wd, p, bd)                                       # (N, K, M)
    sim = jnp.einsum("nkq,nkm->nqm", q, k) * (float(key_channels) ** -0.5)
    sim = jax.nn.softmax(sim, axis=-1)                      # (N, HW, M)
    ctx = jnp.einsum("nqm,nkm->nkq", sim, v)                # (N, K, HW)
    out = lr(wu, ctx, bu)                                   # (N, C, HW)
    return out.reshape(N, C, H, W)


# ----------------------------------------------------------------------------- demo
if __name__ == "__main__":
    N, C, K = 2, 4, 8          # batch, in_channels, key_channels
    Hp, Wp = 8, 1              # proxy (object regions) -> M = 8

    root = jax.random.PRNGKey(0)
    kx, kp, kw = jax.random.split(root, 3)
    params = _make_params(kw, C, K, dtype=jnp.float32)
    proxy = jax.random.normal(kp, (N, C, Hp, Wp), jnp.float32)

    # 1) f32, tiled HW axis (H=W=16 -> HW=256, two 128-token tiles per batch).
    x = jax.random.normal(kx, (N, C, 16, 16), jnp.float32)
    out = jax.block_until_ready(object_attention_block(x, proxy, params, K, tile_hw=128))
    ref = _reference(x, proxy, params, K)
    assert out.shape == (N, C, 16, 16)
    err = float(jnp.max(jnp.abs(out - ref)))
    # 5e-3 tolerance covers the EUP approx-reciprocal in the softmax denominator.
    assert err < 5e-3, f"f32 mismatch vs reference: {err}"

    # 2) Padded-HW path: H=W=18 -> HW=324 is not a multiple of the 128-token tile.
    x2 = jax.random.normal(jax.random.PRNGKey(1), (N, C, 18, 18), jnp.float32)
    out2 = jax.block_until_ready(object_attention_block(x2, proxy, params, K, tile_hw=128))
    ref2 = _reference(x2, proxy, params, K)
    err2 = float(jnp.max(jnp.abs(out2 - ref2)))
    assert err2 < 5e-3, f"padded-HW mismatch vs reference: {err2}"

    # 3) bf16 activations + bf16 weights (native bf16 MXU path), loose tolerance.
    out_bf = jax.block_until_ready(
        object_attention_block(x.astype(jnp.bfloat16), proxy.astype(jnp.bfloat16),
                               params, K, tile_hw=128))
    err_bf = float(jnp.max(jnp.abs(out_bf.astype(jnp.float32) - ref)))
    assert err_bf < 7.5e-2, f"bf16 mismatch vs f32 reference: {err_bf}"

    print("KERNEL_OK")
</pallas_src>

<mosaic_0001>
module attributes {stable_mosaic.version = 11 : i64} {
  func.func @_oab_kernel(%arg0: i32, %arg1: i32, %arg2: memref<1x4x128xf32, #tpu.memory_space<vmem>>, %arg3: memref<1x8x8xf32, #tpu.memory_space<vmem>>, %arg4: memref<1x8x8xf32, #tpu.memory_space<vmem>>, %arg5: memref<8x4xf32, #tpu.memory_space<vmem>>, %arg6: memref<8x1xf32, #tpu.memory_space<vmem>>, %arg7: memref<8x8xf32, #tpu.memory_space<vmem>>, %arg8: memref<8x1xf32, #tpu.memory_space<vmem>>, %arg9: memref<4x8xf32, #tpu.memory_space<vmem>>, %arg10: memref<4x1xf32, #tpu.memory_space<vmem>>, %arg11: memref<1x4x128xf32, #tpu.memory_space<vmem>>) attributes {dimension_semantics = [#tpu.dimension_semantics<parallel>, #tpu.dimension_semantics<parallel>], iteration_bounds = array<i64: 2, 2>, scalar_prefetch = 0 : i64, scratch_operands = 0 : i64, tpu.core_type = #tpu.core_type<tc>, window_params = [{transform_indices = @transform_0, window_bounds = array<i64: 1, 4, 128>}, {transform_indices = @transform_1, window_bounds = array<i64: 1, 8, 8>}, {transform_indices = @transform_2, window_bounds = array<i64: 1, 8, 8>}, {pipeline_mode = #tpu.pipeline_mode<synchronous>, transform_indices = @transform_3, window_bounds = array<i64: 8, 4>}, {pipeline_mode = #tpu.pipeline_mode<synchronous>, transform_indices = @transform_4, window_bounds = array<i64: 8, 1>}, {pipeline_mode = #tpu.pipeline_mode<synchronous>, transform_indices = @transform_5, window_bounds = array<i64: 8, 8>}, {pipeline_mode = #tpu.pipeline_mode<synchronous>, transform_indices = @transform_6, window_bounds = array<i64: 8, 1>}, {pipeline_mode = #tpu.pipeline_mode<synchronous>, transform_indices = @transform_7, window_bounds = array<i64: 4, 8>}, {pipeline_mode = #tpu.pipeline_mode<synchronous>, transform_indices = @transform_8, window_bounds = array<i64: 4, 1>}, {transform_indices = @transform_9, window_bounds = array<i64: 1, 4, 128>}]} {
    %c0 = arith.constant 0 : index
    %c0_0 = arith.constant 0 : index
    %c0_1 = arith.constant 0 : index
    %0 = vector.load %arg2[%c0, %c0_0, %c0_1] : memref<1x4x128xf32, #tpu.memory_space<vmem>>, vector<1x4x128xf32>
    %1 = vector.shape_cast %0 : vector<1x4x128xf32> to vector<4x128xf32>
    %c0_2 = arith.constant 0 : index
    %c0_3 = arith.constant 0 : index
    %c0_4 = arith.constant 0 : index
    %2 = vector.load %arg3[%c0_2, %c0_3, %c0_4] : memref<1x8x8xf32, #tpu.memory_space<vmem>>, vector<1x8x8xf32>
    %3 = vector.shape_cast %2 : vector<1x8x8xf32> to vector<8x8xf32>
    %c0_5 = arith.constant 0 : index
    %c0_6 = arith.constant 0 : index
    %c0_7 = arith.constant 0 : index
    %4 = vector.load %arg4[%c0_5, %c0_6, %c0_7] : memref<1x8x8xf32, #tpu.memory_space<vmem>>, vector<1x8x8xf32>
    %5 = vector.shape_cast %4 : vector<1x8x8xf32> to vector<8x8xf32>
    %c0_8 = arith.constant 0 : index
    %c0_9 = arith.constant 0 : index
    %6 = vector.load %arg5[%c0_8, %c0_9] : memref<8x4xf32, #tpu.memory_space<vmem>>, vector<8x4xf32>
    %cst = arith.constant dense<0.000000e+00> : vector<8x128xf32>
    %7 = tpu.matmul %6, %1, %cst {dimension_numbers = #tpu.dot_dimension_numbers<[1], [0], [0], [1], [0, 0, 1, 1], [], []>} : vector<8x4xf32>, vector<4x128xf32>, vector<8x128xf32> -> vector<8x128xf32>
    %c0_10 = arith.constant 0 : index
    %c0_11 = arith.constant 0 : index
    %8 = vector.load %arg6[%c0_10, %c0_11] : memref<8x1xf32, #tpu.memory_space<vmem>>, vector<8x1xf32>
    %9 = vector.broadcast %8 : vector<8x1xf32> to vector<8x128xf32>
    %10 = arith.addf %7, %9 : vector<8x128xf32>
    %cst_12 = arith.constant 0.000000e+00 : f32
    %11 = vector.broadcast %cst_12 : f32 to vector<8x128xf32>
    %12 = arith.maximumf %10, %11 : vector<8x128xf32>
    %c0_13 = arith.constant 0 : index
    %c0_14 = arith.constant 0 : index
    %13 = vector.load %arg7[%c0_13, %c0_14] : memref<8x8xf32, #tpu.memory_space<vmem>>, vector<8x8xf32>
    %cst_15 = arith.constant dense<0.000000e+00> : vector<8x128xf32>
    %14 = tpu.matmul %13, %12, %cst_15 {dimension_numbers = #tpu.dot_dimension_numbers<[1], [0], [0], [1], [0, 0, 1, 1], [], []>} : vector<8x8xf32>, vector<8x128xf32>, vector<8x128xf32> -> vector<8x128xf32>
    %c0_16 = arith.constant 0 : index
    %c0_17 = arith.constant 0 : index
    %15 = vector.load %arg8[%c0_16, %c0_17] : memref<8x1xf32, #tpu.memory_space<vmem>>, vector<8x1xf32>
    %16 = vector.broadcast %15 : vector<8x1xf32> to vector<8x128xf32>
    %17 = arith.addf %14, %16 : vector<8x128xf32>
    %cst_18 = arith.constant 0.000000e+00 : f32
    %18 = vector.broadcast %cst_18 : f32 to vector<8x128xf32>
    %19 = arith.maximumf %17, %18 : vector<8x128xf32>
    %cst_19 = arith.constant dense<0.000000e+00> : vector<8x128xf32>
    %20 = tpu.matmul %3, %19, %cst_19 {dimension_numbers = #tpu.dot_dimension_numbers<[0], [0], [1], [1], [0, 1, 1, 1], [], []>} : vector<8x8xf32>, vector<8x128xf32>, vector<8x128xf32> -> vector<8x128xf32>
    %cst_20 = arith.constant dense<0xFF800000> : vector<128xf32>
    %21 = vector.multi_reduction <maximumf>, %20, %cst_20 [0] : vector<8x128xf32> to vector<128xf32>
    %22 = vector.shape_cast %21 : vector<128xf32> to vector<1x128xf32>
    %23 = vector.broadcast %22 : vector<1x128xf32> to vector<8x128xf32>
    %24 = arith.subf %20, %23 : vector<8x128xf32>
    %25 = math.exp %24 : vector<8x128xf32>
    %cst_21 = arith.constant dense<0.000000e+00> : vector<128xf32>
    %26 = vector.multi_reduction <add>, %25, %cst_21 [0] : vector<8x128xf32> to vector<128xf32>
    %27 = vector.shape_cast %26 : vector<128xf32> to vector<1x128xf32>
    %28 = tpu.reciprocal %27 {approx = true} : vector<1x128xf32> -> vector<1x128xf32>
    %29 = vector.broadcast %28 : vector<1x128xf32> to vector<8x128xf32>
    %30 = arith.mulf %25, %29 : vector<8x128xf32>
    %cst_22 = arith.constant dense<0.000000e+00> : vector<8x128xf32>
    %31 = tpu.matmul %5, %30, %cst_22 {dimension_numbers = #tpu.dot_dimension_numbers<[1], [0], [0], [1], [0, 0, 1, 1], [], []>} : vector<8x8xf32>, vector<8x128xf32>, vector<8x128xf32> -> vector<8x128xf32>
    %c0_23 = arith.constant 0 : index
    %c0_24 = arith.constant 0 : index
    %32 = vector.load %arg9[%c0_23, %c0_24] : memref<4x8xf32, #tpu.memory_space<vmem>>, vector<4x8xf32>
    %cst_25 = arith.constant dense<0.000000e+00> : vector<4x128xf32>
    %33 = tpu.matmul %32, %31, %cst_25 {dimension_numbers = #tpu.dot_dimension_numbers<[1], [0], [0], [1], [0, 0, 1, 1], [], []>} : vector<4x8xf32>, vector<8x128xf32>, vector<4x128xf32> -> vector<4x128xf32>
    %c0_26 = arith.constant 0 : index
    %c0_27 = arith.constant 0 : index
    %34 = vector.load %arg10[%c0_26, %c0_27] : memref<4x1xf32, #tpu.memory_space<vmem>>, vector<4x1xf32>
    %35 = vector.broadcast %34 : vector<4x1xf32> to vector<4x128xf32>
    %36 = arith.addf %33, %35 : vector<4x128xf32>
    %cst_28 = arith.constant 0.000000e+00 : f32
    %37 = vector.broadcast %cst_28 : f32 to vector<4x128xf32>
    %38 = arith.maximumf %36, %37 : vector<4x128xf32>
    %c0_29 = arith.constant 0 : index
    %c0_30 = arith.constant 0 : index
    %c0_31 = arith.constant 0 : index
    %39 = vector.load %arg11[%c0_29, %c0_30, %c0_31] : memref<1x4x128xf32, #tpu.memory_space<vmem>>, vector<1x4x128xf32>
    %40 = vector.shape_cast %39 : vector<1x4x128xf32> to vector<4x128xf32>
    %41 = vector.shape_cast %38 : vector<4x128xf32> to vector<1x4x128xf32>
    tpu.vector_store %arg11[%c0_29, %c0_30, %c0_31], %41 {strides = array<i32>} : memref<1x4x128xf32, #tpu.memory_space<vmem>>, vector<1x4x128xf32>,
    return
  }
  func.func @transform_0(%arg0: i32, %arg1: i32) -> (i32, i32, i32) {
    %c0_i32 = arith.constant 0 : i32
    %c0_i32_0 = arith.constant 0 : i32
    return %arg0, %c0_i32, %arg1 : i32, i32, i32
  }
  func.func @transform_1(%arg0: i32, %arg1: i32) -> (i32, i32, i32) {
    %c0_i32 = arith.constant 0 : i32
    %c0_i32_0 = arith.constant 0 : i32
    %c0_i32_1 = arith.constant 0 : i32
    return %arg0, %c0_i32, %c0_i32_0 : i32, i32, i32
  }
  func.func @transform_2(%arg0: i32, %arg1: i32) -> (i32, i32, i32) {
    %c0_i32 = arith.constant 0 : i32
    %c0_i32_0 = arith.constant 0 : i32
    %c0_i32_1 = arith.constant 0 : i32
    return %arg0, %c0_i32, %c0_i32_0 : i32, i32, i32
  }
  func.func @transform_3(%arg0: i32, %arg1: i32) -> (i32, i32) {
    %c0_i32 = arith.constant 0 : i32
    %c0_i32_0 = arith.constant 0 : i32
    %c0_i32_1 = arith.constant 0 : i32
    return %c0_i32, %c0_i32_0 : i32, i32
  }
  func.func @transform_4(%arg0: i32, %arg1: i32) -> (i32, i32) {
    %c0_i32 = arith.constant 0 : i32
    %c0_i32_0 = arith.constant 0 : i32
    %c0_i32_1 = arith.constant 0 : i32
    return %c0_i32, %c0_i32_0 : i32, i32
  }
  func.func @transform_5(%arg0: i32, %arg1: i32) -> (i32, i32) {
    %c0_i32 = arith.constant 0 : i32
    %c0_i32_0 = arith.constant 0 : i32
    %c0_i32_1 = arith.constant 0 : i32
    return %c0_i32, %c0_i32_0 : i32, i32
  }
  func.func @transform_6(%arg0: i32, %arg1: i32) -> (i32, i32) {
    %c0_i32 = arith.constant 0 : i32
    %c0_i32_0 = arith.constant 0 : i32
    %c0_i32_1 = arith.constant 0 : i32
    return %c0_i32, %c0_i32_0 : i32, i32
  }
  func.func @transform_7(%arg0: i32, %arg1: i32) -> (i32, i32) {
    %c0_i32 = arith.constant 0 : i32
    %c0_i32_0 = arith.constant 0 : i32
    %c0_i32_1 = arith.constant 0 : i32
    return %c0_i32, %c0_i32_0 : i32, i32
  }
  func.func @transform_8(%arg0: i32, %arg1: i32) -> (i32, i32) {
    %c0_i32 = arith.constant 0 : i32
    %c0_i32_0 = arith.constant 0 : i32
    %c0_i32_1 = arith.constant 0 : i32
    return %c0_i32, %c0_i32_0 : i32, i32
  }
  func.func @transform_9(%arg0: i32, %arg1: i32) -> (i32, i32, i32) {
    %c0_i32 = arith.constant 0 : i32
    %c0_i32_0 = arith.constant 0 : i32
    return %arg0, %c0_i32, %arg1 : i32, i32, i32
  }
}

</mosaic_0001>

<llo_original>
// kernel: tpu_custom_call.1
$region0: #{tpu_custom_call.1}
  #allocation0 [shape = 'u32[]', space=smem, size = 0x4, offset = 0x4, fixed_abs, tag = 'smem constant byte address 0x4 - core index']
  #allocation1 [shape = 'u32[144,128]{1,0:T(1,128)}', space=vmem, size = 0x12000, scoped, tag = 'internal scratch']
  %s0 = inlined_call_operand.vmem [shape: f32[2,4,256], index: 0, kind: input, shape index: {}]
  %s1 = inlined_call_operand.vmem [shape: f32[2,8,8], index: 1, kind: input, shape index: {}]
  %s2 = inlined_call_operand.hbm [shape: f32[2,8,8], index: 2, kind: input, shape index: {}]
  %s3 = inlined_call_operand.vmem [shape: f32[8,4], index: 3, kind: input, shape index: {}]
  %s4 = inlined_call_operand.vmem [shape: f32[8,1], index: 4, kind: input, shape index: {}]
  %s5 = inlined_call_operand.vmem [shape: f32[8,8], index: 5, kind: input, shape index: {}]
  %s6 = inlined_call_operand.vmem [shape: f32[8,1], index: 6, kind: input, shape index: {}]
  %s7 = inlined_call_operand.vmem [shape: f32[4,8], index: 7, kind: input, shape index: {}]
  %s8 = inlined_call_operand.vmem [shape: f32[4,1], index: 8, kind: input, shape index: {}]
  %s9 = inlined_call_operand.hbm [shape: f32[2,4,256], index: 9, kind: output, shape index: {}]
  %s10 = sld [smem:[#allocation0]]
  $region73: #{tpu_custom_call.1} parent=0
    _
  %s12 = ssub.s32 1, %s10
  %s13 = scalar_select 0, %s12, %s10
  $region1: #{tpu_custom_call.1} parent=0
    #allocation2 [shape = 'u8[8192]{0}', space=vmem, size = 0x2000, scoped, tag = 'input window, operand 2']
    #allocation3 [shape = 's32[2]{0}', space=sflag, size = 0x8, scoped, tag = 'scoped memory for tpu_custom_call.1']
    #allocation4 [shape = 's32[2]{0}', space=sflag, size = 0x8, scoped, tag = 'scoped memory for tpu_custom_call.1']
    #allocation5 [shape = 'u8[4096]{0}', space=vmem, size = 0x1000, scoped, tag = 'output window, operand 0']
    %14 = vsyncpa [#allocation3], 0
    %s15 = scalar_lea.sflag [#allocation3], 1
    %16 = vsyncpa %s15, 0
    %17 = vsyncpa [#allocation4], 0
    %s18 = scalar_lea.sflag [#allocation4], 1
    %19 = vsyncpa %s18, 0
    loop: start=0, step=1, limit=6
    $region2: #{tpu_custom_call.1} parent=1 // loop_pre_header
      _
    $region3: #{tpu_custom_call.1} parent=1 // loop_header
      %s21 = sphi 0, %s25
      %p22 = scmp.ge.s32.totalorder %s21, 6
      %s28 = sphi 0, %s40
      %s29 = sphi 0, %s36
      %s30 = sphi 0, %s28
      %s31 = sphi 0, %s29
      %s32 = sphi 0, %s30
      %s33 = sphi 0, %s31
      %s45 = sphi 0, %s47
      %s48 = sphi 0, %s45
      %s49 = sphi 0, %s48
      %s65 = sphi 0, %s49
      %s71 = sphi 0, %s73
      %s74 = sphi 0, %s71
      %s75 = sphi 0, %s74
      %s91 = sphi 0, %s75
      %s97 = sphi 0, %s99
      %s100 = sphi 0, %s97
      %s101 = sphi 0, %s100
      %s117 = sphi 0, %s101
      %s121 = sphi 0, %s121
      %s123 = sphi 0, %s121
      %s124 = sphi 0, %s123
      %s138 = sphi 0, %s124
      %s142 = sphi 0, %s142
      %s144 = sphi 0, %s142
      %s145 = sphi 0, %s144
      %s159 = sphi 0, %s145
      %s163 = sphi 0, %s163
      %s165 = sphi 0, %s163
      %s166 = sphi 0, %s165
      %s180 = sphi 0, %s166
      %s184 = sphi 0, %s184
      %s186 = sphi 0, %s184
      %s187 = sphi 0, %s186
      %s201 = sphi 0, %s187
      %s205 = sphi 0, %s205
      %s207 = sphi 0, %s205
      %s208 = sphi 0, %s207
      %s222 = sphi 0, %s208
      %s226 = sphi 0, %s226
      %s228 = sphi 0, %s226
      %s229 = sphi 0, %s228
      %s243 = sphi 0, %s229
      %s251 = sphi 0, %s253
      %s254 = sphi 0, %s251
      %s255 = sphi 0, %s254
      %s271 = sphi 0, %s255
    $region4: #{tpu_custom_call.1} parent=1 // loop_header_branch
      %24 = sbr.rel (%p22) target = $region8
    $region5: #{tpu_custom_call.1} parent=1 // loop_body
      %s26 = ssub.s32 %s21, 1
      %s27 = ssub.s32 %s21, 2
      %s34 = sadd.s32 1, %s29
      %p35 = scmp.ge.s32.totalorder %s34, 2
      %s36 = scalar_select %p35, 0, %s34
      %s37 = sadd.s32 1, %s28
      %s38 = scalar_select %p35, %s37, %s28
      %p39 = scmp.ge.s32.totalorder %s38, 2
      %s40 = scalar_select %p39, 0, %s38
      %s41 = ssub.s32 %s28, %s40
      %s42 = ssub.s32 %s29, %s36
      %s43 = sor.u32 %s41, %s42
      %p44 = scmp.eq.s32.totalorder %s43, 0
      %s46 = sadd.s32 %s45, 1
      %s47 = scalar_select %p44, %s45, %s46
      %p50 = pneg %p44
      %p51 = scmp.eq.s32.totalorder %s21, 3
      %p52 = por %p50, %p51
      %p53 = scmp.ne.s32.totalorder %s45, %s48
      %p54 = scmp.eq.s32.totalorder %s21, 0
      %p55 = por %p53, %p54
      %p56 = scmp.ne.s32.totalorder %s45, %s48
      %p57 = scmp.eq.s32.totalorder %s26, 3
      %p58 = por %p56, %p57
      %p59 = scmp.ne.s32.totalorder %s48, %s49
      %p60 = scmp.eq.s32.totalorder %s26, 0
      %p61 = por %p59, %p60
      %p62 = scmp.ne.s32.totalorder %s48, %s49
      %p63 = scmp.eq.s32.totalorder %s27, 3
      %p64 = por %p62, %p63
      %p66 = scmp.ne.s32.totalorder %s49, %s65
      %p67 = scmp.eq.s32.totalorder %s27, 0
      %p68 = por %p66, %p67
      %s69 = ssub.s32 %s28, %s40
      %p70 = scmp.eq.s32.totalorder %s69, 0
      %s72 = sadd.s32 %s71, 1
      %s73 = scalar_select %p70, %s71, %s72
      %p76 = pneg %p70
      %p77 = scmp.eq.s32.totalorder %s21, 3
      %p78 = por %p76, %p77
      %p79 = scmp.ne.s32.totalorder %s71, %s74
      %p80 = scmp.eq.s32.totalorder %s21, 0
      %p81 = por %p79, %p80
      %p82 = scmp.ne.s32.totalorder %s71, %s74
      %p83 = scmp.eq.s32.totalorder %s26, 3
      %p84 = por %p82, %p83
      %p85 = scmp.ne.s32.totalorder %s74, %s75
      %p86 = scmp.eq.s32.totalorder %s26, 0
      %p87 = por %p85, %p86
      %p88 = scmp.ne.s32.totalorder %s74, %s75
      %p89 = scmp.eq.s32.totalorder %s27, 3
      %p90 = por %p88, %p89
      %p92 = scmp.ne.s32.totalorder %s75, %s91
      %p93 = scmp.eq.s32.totalorder %s27, 0
      %p94 = por %p92, %p93
      %s95 = ssub.s32 %s28, %s40
      %p96 = scmp.eq.s32.totalorder %s95, 0
      %s98 = sadd.s32 %s97, 1
      %s99 = scalar_select %p96, %s97, %s98
      %p102 = pneg %p96
      %p103 = scmp.eq.s32.totalorder %s21, 3
      %p104 = por %p102, %p103
      %p105 = scmp.ne.s32.totalorder %s97, %s100
      %p106 = scmp.eq.s32.totalorder %s21, 0
      %p107 = por %p105, %p106
      %p108 = scmp.ne.s32.totalorder %s97, %s100
      %p109 = scmp.eq.s32.totalorder %s26, 3
      %p110 = por %p108, %p109
      %p111 = scmp.ne.s32.totalorder %s100, %s101
      %p112 = scmp.eq.s32.totalorder %s26, 0
      %p113 = por %p111, %p112
      %p114 = scmp.ne.s32.totalorder %s100, %s101
      %p115 = scmp.eq.s32.totalorder %s27, 3
      %p116 = por %p114, %p115
      %p118 = scmp.ne.s32.totalorder %s101, %s117
      %p119 = scmp.eq.s32.totalorder %s27, 0
      %p120 = por %p118, %p119
      %s122 = sadd.s32 %s121, 1
      %p125 = scmp.eq.s32.totalorder %s21, 3
      %p126 = scmp.ne.s32.totalorder %s121, %s123
      %p127 = scmp.eq.s32.totalorder %s21, 0
      %p128 = por %p126, %p127
      %p129 = scmp.ne.s32.totalorder %s121, %s123
      %p130 = scmp.eq.s32.totalorder %s26, 3
      %p131 = por %p129, %p130
      %p132 = scmp.ne.s32.totalorder %s123, %s124
      %p133 = scmp.eq.s32.totalorder %s26, 0
      %p134 = por %p132, %p133
      %p135 = scmp.ne.s32.totalorder %s123, %s124
      %p136 = scmp.eq.s32.totalorder %s27, 3
      %p137 = por %p135, %p136
      %p139 = scmp.ne.s32.totalorder %s124, %s138
      %p140 = scmp.eq.s32.totalorder %s27, 0
      %p141 = por %p139, %p140
      %s143 = sadd.s32 %s142, 1
      %p146 = scmp.eq.s32.totalorder %s21, 3
      %p147 = scmp.ne.s32.totalorder %s142, %s144
      %p148 = scmp.eq.s32.totalorder %s21, 0
      %p149 = por %p147, %p148
      %p150 = scmp.ne.s32.totalorder %s142, %s144
      %p151 = scmp.eq.s32.totalorder %s26, 3
      %p152 = por %p150, %p151
      %p153 = scmp.ne.s32.totalorder %s144, %s145
      %p154 = scmp.eq.s32.totalorder %s26, 0
      %p155 = por %p153, %p154
      %p156 = scmp.ne.s32.totalorder %s144, %s145
      %p157 = scmp.eq.s32.totalorder %s27, 3
      %p158 = por %p156, %p157
      %p160 = scmp.ne.s32.totalorder %s145, %s159
      %p161 = scmp.eq.s32.totalorder %s27, 0
      %p162 = por %p160, %p161
      %s164 = sadd.s32 %s163, 1
      %p167 = scmp.eq.s32.totalorder %s21, 3
      %p168 = scmp.ne.s32.totalorder %s163, %s165
      %p169 = scmp.eq.s32.totalorder %s21, 0
      %p170 = por %p168, %p169
      %p171 = scmp.ne.s32.totalorder %s163, %s165
      %p172 = scmp.eq.s32.totalorder %s26, 3
      %p173 = por %p171, %p172
      %p174 = scmp.ne.s32.totalorder %s165, %s166
      %p175 = scmp.eq.s32.totalorder %s26, 0
      %p176 = por %p174, %p175
      %p177 = scmp.ne.s32.totalorder %s165, %s166
      %p178 = scmp.eq.s32.totalorder %s27, 3
      %p179 = por %p177, %p178
      %p181 = scmp.ne.s32.totalorder %s166, %s180
      %p182 = scmp.eq.s32.totalorder %s27, 0
      %p183 = por %p181, %p182
      %s185 = sadd.s32 %s184, 1
      %p188 = scmp.eq.s32.totalorder %s21, 3
      %p189 = scmp.ne.s32.totalorder %s184, %s186
      %p190 = scmp.eq.s32.totalorder %s21, 0
      %p191 = por %p189, %p190
      %p192 = scmp.ne.s32.totalorder %s184, %s186
      %p193 = scmp.eq.s32.totalorder %s26, 3
      %p194 = por %p192, %p193
      %p195 = scmp.ne.s32.totalorder %s186, %s187
      %p196 = scmp.eq.s32.totalorder %s26, 0
      %p197 = por %p195, %p196
      %p198 = scmp.ne.s32.totalorder %s186, %s187
      %p199 = scmp.eq.s32.totalorder %s27, 3
      %p200 = por %p198, %p199
      %p202 = scmp.ne.s32.totalorder %s187, %s201
      %p203 = scmp.eq.s32.totalorder %s27, 0
      %p204 = por %p202, %p203
      %s206 = sadd.s32 %s205, 1
      %p209 = scmp.eq.s32.totalorder %s21, 3
      %p210 = scmp.ne.s32.totalorder %s205, %s207
      %p211 = scmp.eq.s32.totalorder %s21, 0
      %p212 = por %p210, %p211
      %p213 = scmp.ne.s32.totalorder %s205, %s207
      %p214 = scmp.eq.s32.totalorder %s26, 3
      %p215 = por %p213, %p214
      %p216 = scmp.ne.s32.totalorder %s207, %s208
      %p217 = scmp.eq.s32.totalorder %s26, 0
      %p218 = por %p216, %p217
      %p219 = scmp.ne.s32.totalorder %s207, %s208
      %p220 = scmp.eq.s32.totalorder %s27, 3
      %p221 = por %p219, %p220
      %p223 = scmp.ne.s32.totalorder %s208, %s222
      %p224 = scmp.eq.s32.totalorder %s27, 0
      %p225 = por %p223, %p224
      %s227 = sadd.s32 %s226, 1
      %p230 = scmp.eq.s32.totalorder %s21, 3
      %p231 = scmp.ne.s32.totalorder %s226, %s228
      %p232 = scmp.eq.s32.totalorder %s21, 0
      %p233 = por %p231, %p232
      %p234 = scmp.ne.s32.totalorder %s226, %s228
      %p235 = scmp.eq.s32.totalorder %s26, 3
      %p236 = por %p234, %p235
      %p237 = scmp.ne.s32.totalorder %s228, %s229
      %p238 = scmp.eq.s32.totalorder %s26, 0
      %p239 = por %p237, %p238
      %p240 = scmp.ne.s32.totalorder %s228, %s229
      %p241 = scmp.eq.s32.totalorder %s27, 3
      %p242 = por %p240, %p241
      %p244 = scmp.ne.s32.totalorder %s229, %s243
      %p245 = scmp.eq.s32.totalorder %s27, 0
      %p246 = por %p244, %p245
      %s247 = ssub.s32 %s28, %s40
      %s248 = ssub.s32 %s29, %s36
      %s249 = sor.u32 %s247, %s248
      %p250 = scmp.eq.s32.totalorder %s249, 0
      %s252 = sadd.s32 %s251, 1
      %s253 = scalar_select %p250, %s251, %s252
      %p256 = pneg %p250
      %p257 = scmp.eq.s32.totalorder %s21, 3
      %p258 = por %p256, %p257
      %p259 = scmp.ne.s32.totalorder %s251, %s254
      %p260 = scmp.eq.s32.totalorder %s21, 0
      %p261 = por %p259, %p260
      %p262 = scmp.ne.s32.totalorder %s251, %s254
      %p263 = scmp.eq.s32.totalorder %s26, 3
      %p264 = por %p262, %p263
      %p265 = scmp.ne.s32.totalorder %s254, %s255
      %p266 = scmp.eq.s32.totalorder %s26, 0
      %p267 = por %p265, %p266
      %p268 = scmp.ne.s32.totalorder %s254, %s255
      %p269 = scmp.eq.s32.totalorder %s27, 3
      %p270 = por %p268, %p269
      %p272 = scmp.ne.s32.totalorder %s255, %s271
      %p273 = scmp.eq.s32.totalorder %s27, 0
      %p274 = por %p272, %p273
      %p275 = scmp.le.s32.totalorder 1, %s21
      %p276 = scmp.lt.s32.totalorder %s21, 5
      %p277 = pnand %p275, %p276
      %p278 = pneg %p277
      // Predicated region
      $region9: #{tpu_custom_call.1} parent=5 // pred_check
        _
      $region10: #{tpu_custom_call.1} parent=5 // pred_check_branch
        %280 = sbr.rel (%p277) target = $region12
      $region11: #{tpu_custom_call.1} parent=5 // pred_region
        %s281 = ssub.s32 %s21, 1
        // Predicated region
        $region13: #{tpu_custom_call.1} parent=11 // pred_check
          %p282 = pneg %p134
        $region14: #{tpu_custom_call.1} parent=11 // pred_check_branch
          %284 = sbr.rel (%p282) target = $region16
        $region15: #{tpu_custom_call.1} parent=11 // pred_region
          _
        $region16: #{tpu_custom_call.1} parent=11 // pred_fallthru
          _
        // Predicated region
        $region17: #{tpu_custom_call.1} parent=11 // pred_check
          %p285 = pneg %p155
        $region18: #{tpu_custom_call.1} parent=11 // pred_check_branch
          %287 = sbr.rel (%p285) target = $region20
        $region19: #{tpu_custom_call.1} parent=11 // pred_region
          _
        $region20: #{tpu_custom_call.1} parent=11 // pred_fallthru
          _
        // Predicated region
        $region21: #{tpu_custom_call.1} parent=11 // pred_check
          %p288 = pneg %p176
        $region22: #{tpu_custom_call.1} parent=11 // pred_check_branch
          %290 = sbr.rel (%p288) target = $region24
        $region23: #{tpu_custom_call.1} parent=11 // pred_region
          _
        $region24: #{tpu_custom_call.1} parent=11 // pred_fallthru
          _
        // Predicated region
        $region25: #{tpu_custom_call.1} parent=11 // pred_check
          %p291 = pneg %p197
        $region26: #{tpu_custom_call.1} parent=11 // pred_check_branch
          %293 = sbr.rel (%p291) target = $region28
        $region27: #{tpu_custom_call.1} parent=11 // pred_region
          _
        $region28: #{tpu_custom_call.1} parent=11 // pred_fallthru
          _
        // Predicated region
        $region29: #{tpu_custom_call.1} parent=11 // pred_check
          %p294 = pneg %p218
        $region30: #{tpu_custom_call.1} parent=11 // pred_check_branch
          %296 = sbr.rel (%p294) target = $region32
        $region31: #{tpu_custom_call.1} parent=11 // pred_region
          _
        $region32: #{tpu_custom_call.1} parent=11 // pred_fallthru
          _
        // Predicated region
        $region33: #{tpu_custom_call.1} parent=11 // pred_check
          %p297 = pneg %p239
        $region34: #{tpu_custom_call.1} parent=11 // pred_check_branch
          %299 = sbr.rel (%p297) target = $region36
        $region35: #{tpu_custom_call.1} parent=11 // pred_region
          _
        $region36: #{tpu_custom_call.1} parent=11 // pred_fallthru
          _
      $region12: #{tpu_custom_call.1} parent=5 // pred_fallthru
        _
      %p300 = scmp.lt.s32.totalorder %s21, 4
      // Predicated region
      $region37: #{tpu_custom_call.1} parent=5 // pred_check
        %p301 = pneg %p300
      $region38: #{tpu_custom_call.1} parent=5 // pred_check_branch
        %303 = sbr.rel (%p301) target = $region40
      $region39: #{tpu_custom_call.1} parent=5 // pred_region
        // Predicated region
        $region41: #{tpu_custom_call.1} parent=39 // pred_check
          %p304 = pneg %p55
        $region42: #{tpu_custom_call.1} parent=39 // pred_check_branch
          %306 = sbr.rel (%p304) target = $region44
        $region43: #{tpu_custom_call.1} parent=39 // pred_region
          %p307 = scmp.lt.s32.totalorder %s28, 1
          %s308 = scalar_select %p307, %s28, 1
          %p309 = scmp.lt.s32.totalorder %s29, 1
          %s310 = scalar_select %p309, %s29, 1
          %s311 = smul.addr %s308, 2
          %s312 = sadd.s32 %s310, %s311
          %s313 = smul.addr %s312, 4
          %s314 = scalar_lea.vmem %s0, %s313
        $region44: #{tpu_custom_call.1} parent=39 // pred_fallthru
          _
        // Predicated region
        $region45: #{tpu_custom_call.1} parent=39 // pred_check
          %p315 = pneg %p81
        $region46: #{tpu_custom_call.1} parent=39 // pred_check_branch
          %317 = sbr.rel (%p315) target = $region48
        $region47: #{tpu_custom_call.1} parent=39 // pred_region
          %p318 = scmp.lt.s32.totalorder %s28, 1
          %s319 = scalar_select %p318, %s28, 1
          %s320 = smul.addr %s319, 8
          %s321 = scalar_lea.vmem %s1, %s320
        $region48: #{tpu_custom_call.1} parent=39 // pred_fallthru
          _
        // Predicated region
        $region49: #{tpu_custom_call.1} parent=39 // pred_check
          %p322 = pneg %p107
        $region50: #{tpu_custom_call.1} parent=39 // pred_check_branch
          %324 = sbr.rel (%p322) target = $region52
        $region51: #{tpu_custom_call.1} parent=39 // pred_region
          %s325 = sand.u32 %s97, 1
          %s326 = scalar_lea.sflag [#allocation3], %s325
          %s327 = sand.u32 %s97, 1
          %s328 = smul.addr %s327, 8
          %s329 = scalar_lea.vmem [#allocation2], %s328
          %s331 = ssub.s32 128, 128
          %332 = vsyncadd %s326, %s331
          %s333 = smul.addr %s28, 128
          %s334 = scalar_lea.hbm %s2, %s333
          %s336 = sshll.u32 %s329, 4
          %s337 = int_to_ptr.vmem [resolvable:$true] %s336
          %339 = dma.hbm_to_vmem [thread:$0]  %s334, 128, %s337, %s326
        $region52: #{tpu_custom_call.1} parent=39 // pred_fallthru
          _
      $region40: #{tpu_custom_call.1} parent=5 // pred_fallthru
        _
      %p340 = scmp.le.s32.totalorder 1, %s21
      %p341 = scmp.lt.s32.totalorder %s21, 5
      %p342 = pnand %p340, %p341
      %p343 = pneg %p342
      // Predicated region
      $region53: #{tpu_custom_call.1} parent=5 // pred_check
        _
      $region54: #{tpu_custom_call.1} parent=5 // pred_check_branch
        %345 = sbr.rel (%p342) target = $region56
      $region55: #{tpu_custom_call.1} parent=5 // pred_region
        %s346 = ssub.s32 %s21, 1
        %s347 = sand.u32 %s100, 1
        %s348 = scalar_lea.sflag [#allocation3], %s347
        %s349 = sand.u32 %s100, 1
        %s350 = smul.addr %s349, 8
        %s351 = scalar_lea.vmem [#allocation2], %s350
        // Predicated region
        $region57: #{tpu_custom_call.1} parent=55 // pred_check
          %p352 = pneg %p113
        $region58: #{tpu_custom_call.1} parent=55 // pred_check_branch
          %354 = sbr.rel (%p352) target = $region60
        $region59: #{tpu_custom_call.1} parent=55 // pred_region
          %355 = dma.done %s348, 128
        $region60: #{tpu_custom_call.1} parent=55 // pred_fallthru
          _
        %p356 = scmp.lt.s32.totalorder %s30, 1
        %s357 = scalar_select %p356, %s30, 1
        %p358 = scmp.lt.s32.totalorder %s31, 1
        %s359 = scalar_select %p358, %s31, 1
        %s360 = smul.addr %s357, 2
        %s361 = sadd.s32 %s359, %s360
        %s362 = smul.addr %s361, 4
        %s363 = scalar_lea.vmem %s0, %s362
        %p364 = pneg %p61
        %p365 = pneg %p58
        %p366 = scmp.lt.s32.totalorder %s30, 1
        %s367 = scalar_select %p366, %s30, 1
        %s368 = smul.addr %s367, 8
        %s369 = scalar_lea.vmem %s1, %s368
        %p370 = pneg %p87
        %p371 = pneg %p84
        %s372 = sand.u32 %s100, 1
        %s373 = scalar_lea.sflag [#allocation3], %s372
        %s374 = sand.u32 %s100, 1
        %s375 = smul.addr %s374, 8
        %s376 = scalar_lea.vmem [#allocation2], %s375
        %p377 = pneg %p113
        %p378 = pneg %p110
        %p379 = pneg %p134
        %p380 = pneg %p131
        %p381 = pneg %p155
        %p382 = pneg %p152
        %p383 = pneg %p176
        %p384 = pneg %p173
        %p385 = pneg %p197
        %p386 = pneg %p194
        %p387 = pneg %p218
        %p388 = pneg %p215
        %p389 = pneg %p239
        %p390 = pneg %p236
        %p391 = pneg %p267
        %p392 = pneg %p264
        %s393 = sand.u32 %s254, 1
        %s394 = scalar_lea.sflag [#allocation4], %s393
        %s395 = sand.u32 %s254, 1
        %s396 = smul.addr %s395, 4
        %s397 = scalar_lea.vmem [#allocation5], %s396
        %p398 = scmp.lt.s32.totalorder %s30, 1
        %s399 = scalar_select %p398, %s30, 1
        %p400 = scmp.lt.s32.totalorder %s31, 1
        %s401 = scalar_select %p400, %s31, 1
        %s402 = smul.addr %s399, 2
        %s403 = sadd.s32 %s401, %s402
        %s404 = smul.addr %s403, 4
        %s405 = scalar_lea.vmem %s0, %s404
        %p406 = scmp.lt.s32.totalorder %s30, 1
        %s407 = scalar_select %p406, %s30, 1
        %s408 = smul.addr %s407, 8
        %s409 = scalar_lea.vmem %s1, %s408
        %v410 = vld [vmem:[%s405] sm:$0xf]
        %v411 = vld [vmem:[%s409] sm:$0xff]
        %v412 = vld [vmem:[%s351] sm:$0xff]
        %v413 = vld [vmem:[%s3] sm:$0xff]
        %v414 = vld [vmem:[%s4] sm:$0xff]
        %416 = vset.pattern.permute.xlu0 0
        %417 = vperm.xlu0 %416, %v414
        %v418 = vpop.permute.xlu0 %417
        %vm420 = vcmask 31744
        %v422 = vsel %vm420, %v413, 0
        %vm424 = vcmask 1043456
        %v426 = vsel %vm424, %v410, 0
        %428 = vmatprep.subr.mxu0 0.0
        %429 = vmatpush1.msra.mxu0 0.0
        %430 = vmatprep.subr.mxu0 0.0
        %431 = vmatpush1.msra.mxu0 0.0
        %432 = vmatprep.subr.mxu0 0.0
        %433 = vmatpush1.msra.mxu0 0.0
        %434 = vmatprep.subr.mxu0 0.0
        %435 = vmatpush1.msra.mxu0 0.0
        %436 = vmatprep.subr.mxu0 0.0
        %437 = vmatpush1.msra.mxu0 0.0
        %438 = vmatprep.subr.mxu0 0.0
        %439 = vmatpush1.msra.mxu0 0.0
        %440 = vmatprep.subr.mxu0 0.0
        %441 = vmatpush1.msra.mxu0 0.0
        %442 = vmatprep.subr.mxu0 0.0
        %443 = vmatpush1.msra.mxu0 0.0
        %444 = vmatprep.subr.mxu0 0.0
        %445 = vmatpush1.msra.mxu0 0.0
        %446 = vmatprep.subr.mxu0 0.0
        %447 = vmatpush1.msra.mxu0 0.0
        %448 = vmatprep.subr.mxu0 0.0
        %449 = vmatpush1.msra.mxu0 0.0
        %450 = vmatprep.subr.mxu0 0.0
        %451 = vmatpush1.msra.mxu0 0.0
        %452 = vmatprep.subr.mxu0 0.0
        %453 = vmatpush1.msra.mxu0 0.0
        %454 = vmatprep.subr.mxu0 0.0
        %455 = vmatpush1.msra.mxu0 0.0
        %456 = vmatprep.subr.mxu0 0.0
        %457 = vmatpush1.msra.mxu0 0.0
        %458 = vmatprep.subr.mxu0 0.0
        %459 = vmatpush1.msra.mxu0 %v426
        %460 = vmatprep.subr.mxu0 0.0
        %461 = vmatpush2.msra.mxu0 0.0
        %462 = vmatprep.subr.mxu0 0.0
        %463 = vmatpush2.msra.mxu0 0.0
        %464 = vmatprep.subr.mxu0 0.0
        %465 = vmatpush2.msra.mxu0 0.0
        %466 = vmatprep.subr.mxu0 0.0
        %467 = vmatpush2.msra.mxu0 0.0
        %468 = vmatprep.subr.mxu0 0.0
        %469 = vmatpush2.msra.mxu0 0.0
        %470 = vmatprep.subr.mxu0 0.0
        %471 = vmatpush2.msra.mxu0 0.0
        %472 = vmatprep.subr.mxu0 0.0
        %473 = vmatpush2.msra.mxu0 0.0
        %474 = vmatprep.subr.mxu0 0.0
        %475 = vmatpush2.msra.mxu0 0.0
        %476 = vmatprep.subr.mxu0 0.0
        %477 = vmatpush2.msra.mxu0 0.0
        %478 = vmatprep.subr.mxu0 0.0
        %479 = vmatpush2.msra.mxu0 0.0
        %480 = vmatprep.subr.mxu0 0.0
        %481 = vmatpush2.msra.mxu0 0.0
        %482 = vmatprep.subr.mxu0 0.0
        %483 = vmatpush2.msra.mxu0 0.0
        %484 = vmatprep.subr.mxu0 0.0
        %485 = vmatpush2.msra.mxu0 0.0
        %486 = vmatprep.subr.mxu0 0.0
        %487 = vmatpush2.msra.mxu0 0.0
        %488 = vmatprep.subr.mxu0 0.0
        %489 = vmatpush2.msra.mxu0 0.0
        %490 = vmatprep.subr.mxu0 0.0
        %491 = vmatpush2.msra.mxu0 0.0
        %492 = vmatprep.mubr.f32.mxu0 0.0
        %493 = vmatmul.mubr.f32.gmra.mxu0 %v422
        %v494 = vpop.f32.mrf.mxu0
        %v495 = vadd.f32 %v418, %v494
        %v496 = vpop.f32.mrf.mxu0
        %497 = vdwg.mxu0
        %v498 = vmax.f32 %v495, 0.0
        %v499 = vld [vmem:[%s5] sm:$0xff]
        %v500 = vld [vmem:[%s6] sm:$0xff]
        %502 = vset.pattern.permute.xlu0 0
        %503 = vperm.xlu0 %502, %v500
        %v504 = vpop.permute.xlu0 %503
        %vm506 = vcmask 64512
        %v508 = vsel %vm506, %v499, 0
        %510 = vmatprep.subr.mxu0 0.0
        %511 = vmatpush1.msra.mxu0 0.0
        %512 = vmatprep.subr.mxu0 0.0
        %513 = vmatpush1.msra.mxu0 0.0
        %514 = vmatprep.subr.mxu0 0.0
        %515 = vmatpush1.msra.mxu0 0.0
        %516 = vmatprep.subr.mxu0 0.0
        %517 = vmatpush1.msra.mxu0 0.0
        %518 = vmatprep.subr.mxu0 0.0
        %519 = vmatpush1.msra.mxu0 0.0
        %520 = vmatprep.subr.mxu0 0.0
        %521 = vmatpush1.msra.mxu0 0.0
        %522 = vmatprep.subr.mxu0 0.0
        %523 = vmatpush1.msra.mxu0 0.0
        %524 = vmatprep.subr.mxu0 0.0
        %525 = vmatpush1.msra.mxu0 0.0
        %526 = vmatprep.subr.mxu0 0.0
        %527 = vmatpush1.msra.mxu0 0.0
        %528 = vmatprep.subr.mxu0 0.0
        %529 = vmatpush1.msra.mxu0 0.0
        %530 = vmatprep.subr.mxu0 0.0
        %531 = vmatpush1.msra.mxu0 0.0
        %532 = vmatprep.subr.mxu0 0.0
        %533 = vmatpush1.msra.mxu0 0.0
        %534 = vmatprep.subr.mxu0 0.0
        %535 = vmatpush1.msra.mxu0 0.0
        %536 = vmatprep.subr.mxu0 0.0
        %537 = vmatpush1.msra.mxu0 0.0
        %538 = vmatprep.subr.mxu0 0.0
        %539 = vmatpush1.msra.mxu0 0.0
        %540 = vmatprep.subr.mxu0 0.0
        %541 = vmatpush1.msra.mxu0 %v498
        %542 = vmatprep.subr.mxu0 0.0
        %543 = vmatpush2.msra.mxu0 0.0
        %544 = vmatprep.subr.mxu0 0.0
        %545 = vmatpush2.msra.mxu0 0.0
        %546 = vmatprep.subr.mxu0 0.0
        %547 = vmatpush2.msra.mxu0 0.0
        %548 = vmatprep.subr.mxu0 0.0
        %549 = vmatpush2.msra.mxu0 0.0
        %550 = vmatprep.subr.mxu0 0.0
        %551 = vmatpush2.msra.mxu0 0.0
        %552 = vmatprep.subr.mxu0 0.0
        %553 = vmatpush2.msra.mxu0 0.0
        %554 = vmatprep.subr.mxu0 0.0
        %555 = vmatpush2.msra.mxu0 0.0
        %556 = vmatprep.subr.mxu0 0.0
        %557 = vmatpush2.msra.mxu0 0.0
        %558 = vmatprep.subr.mxu0 0.0
        %559 = vmatpush2.msra.mxu0 0.0
        %560 = vmatprep.subr.mxu0 0.0
        %561 = vmatpush2.msra.mxu0 0.0
        %562 = vmatprep.subr.mxu0 0.0
        %563 = vmatpush2.msra.mxu0 0.0
        %564 = vmatprep.subr.mxu0 0.0
        %565 = vmatpush2.msra.mxu0 0.0
        %566 = vmatprep.subr.mxu0 0.0
        %567 = vmatpush2.msra.mxu0 0.0
        %568 = vmatprep.subr.mxu0 0.0
        %569 = vmatpush2.msra.mxu0 0.0
        %570 = vmatprep.subr.mxu0 0.0
        %571 = vmatpush2.msra.mxu0 0.0
        %572 = vmatprep.subr.mxu0 0.0
        %573 = vmatpush2.msra.mxu0 0.0
        %574 = vmatprep.mubr.f32.mxu0 0.0
        %575 = vmatmul.mubr.f32.gmra.mxu0 %v508
        %v576 = vpop.f32.mrf.mxu0
        %v577 = vadd.f32 %v504, %v576
        %v578 = vpop.f32.mrf.mxu0
        %579 = vdwg.mxu0
        %v580 = vmax.f32 %v577, 0.0
        %581 = vxpose.xlu0.b32.start [1/16] %v411, 128
        %582 = vxpose.xlu0.b32.cont [2/16] 0.0, 128
        %583 = vxpose.xlu0.b32.cont [3/16] 0.0, 128
        %584 = vxpose.xlu0.b32.cont [4/16] 0.0, 128
        %585 = vxpose.xlu0.b32.cont [5/16] 0.0, 128
        %586 = vxpose.xlu0.b32.cont [6/16] 0.0, 128
        %587 = vxpose.xlu0.b32.cont [7/16] 0.0, 128
        %588 = vxpose.xlu0.b32.cont [8/16] 0.0, 128
        %589 = vxpose.xlu0.b32.cont [9/16] 0.0, 128
        %590 = vxpose.xlu0.b32.cont [10/16] 0.0, 128
        %591 = vxpose.xlu0.b32.cont [11/16] 0.0, 128
        %592 = vxpose.xlu0.b32.cont [12/16] 0.0, 128
        %593 = vxpose.xlu0.b32.cont [13/16] 0.0, 128
        %594 = vxpose.xlu0.b32.cont [14/16] 0.0, 128
        %595 = vxpose.xlu0.b32.cont [15/16] 0.0, 128
        %596 = vxpose.xlu0.b32.end [16/16] 0.0, 128
        %v597 = vpop.trf.xlu0
        %v598 = vpop.trf.xlu0
        %v599 = vpop.trf.xlu0
        %v600 = vpop.trf.xlu0
        %v601 = vpop.trf.xlu0
        %v602 = vpop.trf.xlu0
        %v603 = vpop.trf.xlu0
        %v604 = vpop.trf.xlu0
        %v605 = vpop.trf.xlu0
        %v606 = vpop.trf.xlu0
        %v607 = vpop.trf.xlu0
        %v608 = vpop.trf.xlu0
        %v609 = vpop.trf.xlu0
        %v610 = vpop.trf.xlu0
        %v611 = vpop.trf.xlu0
        %v612 = vpop.trf.xlu0
        %v614 = vsel %vm506, %v597, 0
        %616 = vmatprep.subr.mxu0 0.0
        %617 = vmatpush1.msra.mxu0 0.0
        %618 = vmatprep.subr.mxu0 0.0
        %619 = vmatpush1.msra.mxu0 0.0
        %620 = vmatprep.subr.mxu0 0.0
        %621 = vmatpush1.msra.mxu0 0.0
        %622 = vmatprep.subr.mxu0 0.0
        %623 = vmatpush1.msra.mxu0 0.0
        %624 = vmatprep.subr.mxu0 0.0
        %625 = vmatpush1.msra.mxu0 0.0
        %626 = vmatprep.subr.mxu0 0.0
        %627 = vmatpush1.msra.mxu0 0.0
        %628 = vmatprep.subr.mxu0 0.0
        %629 = vmatpush1.msra.mxu0 0.0
        %630 = vmatprep.subr.mxu0 0.0
        %631 = vmatpush1.msra.mxu0 0.0
        %632 = vmatprep.subr.mxu0 0.0
        %633 = vmatpush1.msra.mxu0 0.0
        %634 = vmatprep.subr.mxu0 0.0
        %635 = vmatpush1.msra.mxu0 0.0
        %636 = vmatprep.subr.mxu0 0.0
        %637 = vmatpush1.msra.mxu0 0.0
        %638 = vmatprep.subr.mxu0 0.0
        %639 = vmatpush1.msra.mxu0 0.0
        %640 = vmatprep.subr.mxu0 0.0
        %641 = vmatpush1.msra.mxu0 0.0
        %642 = vmatprep.subr.mxu0 0.0
        %643 = vmatpush1.msra.mxu0 0.0
        %644 = vmatprep.subr.mxu0 0.0
        %645 = vmatpush1.msra.mxu0 0.0
        %646 = vmatprep.subr.mxu0 0.0
        %647 = vmatpush1.msra.mxu0 %v580
        %648 = vmatprep.subr.mxu0 0.0
        %649 = vmatpush2.msra.mxu0 0.0
        %650 = vmatprep.subr.mxu0 0.0
        %651 = vmatpush2.msra.mxu0 0.0
        %652 = vmatprep.subr.mxu0 0.0
        %653 = vmatpush2.msra.mxu0 0.0
        %654 = vmatprep.subr.mxu0 0.0
        %655 = vmatpush2.msra.mxu0 0.0
        %656 = vmatprep.subr.mxu0 0.0
        %657 = vmatpush2.msra.mxu0 0.0
        %658 = vmatprep.subr.mxu0 0.0
        %659 = vmatpush2.msra.mxu0 0.0
        %660 = vmatprep.subr.mxu0 0.0
        %661 = vmatpush2.msra.mxu0 0.0
        %662 = vmatprep.subr.mxu0 0.0
        %663 = vmatpush2.msra.mxu0 0.0
        %664 = vmatprep.subr.mxu0 0.0
        %665 = vmatpush2.msra.mxu0 0.0
        %666 = vmatprep.subr.mxu0 0.0
        %667 = vmatpush2.msra.mxu0 0.0
        %668 = vmatprep.subr.mxu0 0.0
        %669 = vmatpush2.msra.mxu0 0.0
        %670 = vmatprep.subr.mxu0 0.0
        %671 = vmatpush2.msra.mxu0 0.0
        %672 = vmatprep.subr.mxu0 0.0
        %673 = vmatpush2.msra.mxu0 0.0
        %674 = vmatprep.subr.mxu0 0.0
        %675 = vmatpush2.msra.mxu0 0.0
        %676 = vmatprep.subr.mxu0 0.0
        %677 = vmatpush2.msra.mxu0 0.0
        %678 = vmatprep.subr.mxu0 0.0
        %679 = vmatpush2.msra.mxu0 0.0
        %680 = vmatprep.mubr.f32.mxu0 0.0
        %681 = vmatmul.mubr.f32.gmra.mxu0 %v614
        %v682 = vpop.f32.mrf.mxu0
        %v683 = vadd.f32 0.0, %v682
        %v684 = vpop.f32.mrf.mxu0
        %685 = vdwg.mxu0
        %v686 = vrot.slane %v683, 4
        %v687 = vmax.f32 %v683, %v686
        %v688 = vrot.slane %v687, 2
        %v689 = vmax.f32 %v687, %v688
        %v690 = vrot.slane %v689, 1
        %v691 = vmax.f32 %v689, %v690
        %v692 = vsub.f32 %v683, %v691
        %v693 = vmul.f32 %v692, 1.442695
        %v694 = vpow.pop %v693
        %v695 = vrot.slane %v694, 4
        %v696 = vadd.f32 %v694, %v695
        %v697 = vrot.slane %v696, 2
        %v698 = vadd.f32 %v696, %v697
        %v699 = vrot.slane %v698, 1
        %v700 = vadd.f32 %v698, %v699
        %v701 = vrcp.pop %v700
        %v702 = vmul.f32 %v694, %v701
        %v704 = vsel %vm506, %v412, 0
        %706 = vmatprep.subr.mxu0 0.0
        %707 = vmatpush1.msra.mxu0 0.0
        %708 = vmatprep.subr.mxu0 0.0
        %709 = vmatpush1.msra.mxu0 0.0
        %710 = vmatprep.subr.mxu0 0.0
        %711 = vmatpush1.msra.mxu0 0.0
        %712 = vmatprep.subr.mxu0 0.0
        %713 = vmatpush1.msra.mxu0 0.0
        %714 = vmatprep.subr.mxu0 0.0
        %715 = vmatpush1.msra.mxu0 0.0
        %716 = vmatprep.subr.mxu0 0.0
        %717 = vmatpush1.msra.mxu0 0.0
        %718 = vmatprep.subr.mxu0 0.0
        %719 = vmatpush1.msra.mxu0 0.0
        %720 = vmatprep.subr.mxu0 0.0
        %721 = vmatpush1.msra.mxu0 0.0
        %722 = vmatprep.subr.mxu0 0.0
        %723 = vmatpush1.msra.mxu0 0.0
        %724 = vmatprep.subr.mxu0 0.0
        %725 = vmatpush1.msra.mxu0 0.0
        %726 = vmatprep.subr.mxu0 0.0
        %727 = vmatpush1.msra.mxu0 0.0
        %728 = vmatprep.subr.mxu0 0.0
        %729 = vmatpush1.msra.mxu0 0.0
        %730 = vmatprep.subr.mxu0 0.0
        %731 = vmatpush1.msra.mxu0 0.0
        %732 = vmatprep.subr.mxu0 0.0
        %733 = vmatpush1.msra.mxu0 0.0
        %734 = vmatprep.subr.mxu0 0.0
        %735 = vmatpush1.msra.mxu0 0.0
        %736 = vmatprep.subr.mxu0 0.0
        %737 = vmatpush1.msra.mxu0 %v702
        %738 = vmatprep.subr.mxu0 0.0
        %739 = vmatpush2.msra.mxu0 0.0
        %740 = vmatprep.subr.mxu0 0.0
        %741 = vmatpush2.msra.mxu0 0.0
        %742 = vmatprep.subr.mxu0 0.0
        %743 = vmatpush2.msra.mxu0 0.0
        %744 = vmatprep.subr.mxu0 0.0
        %745 = vmatpush2.msra.mxu0 0.0
        %746 = vmatprep.subr.mxu0 0.0
        %747 = vmatpush2.msra.mxu0 0.0
        %748 = vmatprep.subr.mxu0 0.0
        %749 = vmatpush2.msra.mxu0 0.0
        %750 = vmatprep.subr.mxu0 0.0
        %751 = vmatpush2.msra.mxu0 0.0
        %752 = vmatprep.subr.mxu0 0.0
        %753 = vmatpush2.msra.mxu0 0.0
        %754 = vmatprep.subr.mxu0 0.0
        %755 = vmatpush2.msra.mxu0 0.0
        %756 = vmatprep.subr.mxu0 0.0
        %757 = vmatpush2.msra.mxu0 0.0
        %758 = vmatprep.subr.mxu0 0.0
        %759 = vmatpush2.msra.mxu0 0.0
        %760 = vmatprep.subr.mxu0 0.0
        %761 = vmatpush2.msra.mxu0 0.0
        %762 = vmatprep.subr.mxu0 0.0
        %763 = vmatpush2.msra.mxu0 0.0
        %764 = vmatprep.subr.mxu0 0.0
        %765 = vmatpush2.msra.mxu0 0.0
        %766 = vmatprep.subr.mxu0 0.0
        %767 = vmatpush2.msra.mxu0 0.0
        %768 = vmatprep.subr.mxu0 0.0
        %769 = vmatpush2.msra.mxu0 0.0
        %770 = vmatprep.mubr.f32.mxu0 0.0
        %771 = vmatmul.mubr.f32.gmra.mxu0 %v704
        %v772 = vpop.f32.mrf.mxu0
        %v773 = vadd.f32 0.0, %v772
        %v774 = vpop.f32.mrf.mxu0
        %775 = vdwg.mxu0
        %v776 = vld [vmem:[%s7] sm:$0xf]
        %v777 = vld [vmem:[%s8] sm:$0xf]
        %779 = vset.pattern.permute.xlu0 0
        %780 = vperm.xlu0 %779, %v777
        %v781 = vpop.permute.xlu0 %780
        %v784 = vsel %vm506, %v776, 0
        %786 = vmatprep.subr.mxu0 0.0
        %787 = vmatpush1.msra.mxu0 0.0
        %788 = vmatprep.subr.mxu0 0.0
        %789 = vmatpush1.msra.mxu0 0.0
        %790 = vmatprep.subr.mxu0 0.0
        %791 = vmatpush1.msra.mxu0 0.0
        %792 = vmatprep.subr.mxu0 0.0
        %793 = vmatpush1.msra.mxu0 0.0
        %794 = vmatprep.subr.mxu0 0.0
        %795 = vmatpush1.msra.mxu0 0.0
        %796 = vmatprep.subr.mxu0 0.0
        %797 = vmatpush1.msra.mxu0 0.0
        %798 = vmatprep.subr.mxu0 0.0
        %799 = vmatpush1.msra.mxu0 0.0
        %800 = vmatprep.subr.mxu0 0.0
        %801 = vmatpush1.msra.mxu0 0.0
        %802 = vmatprep.subr.mxu0 0.0
        %803 = vmatpush1.msra.mxu0 0.0
        %804 = vmatprep.subr.mxu0 0.0
        %805 = vmatpush1.msra.mxu0 0.0
        %806 = vmatprep.subr.mxu0 0.0
        %807 = vmatpush1.msra.mxu0 0.0
        %808 = vmatprep.subr.mxu0 0.0
        %809 = vmatpush1.msra.mxu0 0.0
        %810 = vmatprep.subr.mxu0 0.0
        %811 = vmatpush1.msra.mxu0 0.0
        %812 = vmatprep.subr.mxu0 0.0
        %813 = vmatpush1.msra.mxu0 0.0
        %814 = vmatprep.subr.mxu0 0.0
        %815 = vmatpush1.msra.mxu0 0.0
        %816 = vmatprep.subr.mxu0 0.0
        %817 = vmatpush1.msra.mxu0 %v773
        %818 = vmatprep.subr.mxu0 0.0
        %819 = vmatpush2.msra.mxu0 0.0
        %820 = vmatprep.subr.mxu0 0.0
        %821 = vmatpush2.msra.mxu0 0.0
        %822 = vmatprep.subr.mxu0 0.0
        %823 = vmatpush2.msra.mxu0 0.0
        %824 = vmatprep.subr.mxu0 0.0
        %825 = vmatpush2.msra.mxu0 0.0
        %826 = vmatprep.subr.mxu0 0.0
        %827 = vmatpush2.msra.mxu0 0.0
        %828 = vmatprep.subr.mxu0 0.0
        %829 = vmatpush2.msra.mxu0 0.0
        %830 = vmatprep.subr.mxu0 0.0
        %831 = vmatpush2.msra.mxu0 0.0
        %832 = vmatprep.subr.mxu0 0.0
        %833 = vmatpush2.msra.mxu0 0.0
        %834 = vmatprep.subr.mxu0 0.0
        %835 = vmatpush2.msra.mxu0 0.0
        %836 = vmatprep.subr.mxu0 0.0
        %837 = vmatpush2.msra.mxu0 0.0
        %838 = vmatprep.subr.mxu0 0.0
        %839 = vmatpush2.msra.mxu0 0.0
        %840 = vmatprep.subr.mxu0 0.0
        %841 = vmatpush2.msra.mxu0 0.0
        %842 = vmatprep.subr.mxu0 0.0
        %843 = vmatpush2.msra.mxu0 0.0
        %844 = vmatprep.subr.mxu0 0.0
        %845 = vmatpush2.msra.mxu0 0.0
        %846 = vmatprep.subr.mxu0 0.0
        %847 = vmatpush2.msra.mxu0 0.0
        %848 = vmatprep.subr.mxu0 0.0
        %849 = vmatpush2.msra.mxu0 0.0
        %850 = vmatprep.mubr.f32.mxu0 0.0
        %851 = vmatmul.mubr.f32.gmra.mxu0 %v784
        %v852 = vpop.f32.mrf.mxu0
        %v853 = vadd.f32 %v781, %v852
        %v854 = vpop.f32.mrf.mxu0
        %855 = vdwg.mxu0
        %v856 = vmax.f32 %v853, 0.0
        %857 = vst [vmem:[%s397] sm:$0xf] %v856
        %s858 = sand.u32 %s254, 1
        %s859 = scalar_lea.sflag [#allocation4], %s858
        %s860 = sand.u32 %s254, 1
        %s861 = smul.addr %s860, 4
        %s862 = scalar_lea.vmem [#allocation5], %s861
        // Predicated region
        $region61: #{tpu_custom_call.1} parent=55 // pred_check
          %p863 = pneg %p264
        $region62: #{tpu_custom_call.1} parent=55 // pred_check_branch
          %865 = sbr.rel (%p863) target = $region64
        $region63: #{tpu_custom_call.1} parent=55 // pred_region
          %s867 = ssub.s32 64, 64
          %868 = vsyncadd %s859, %s867
          %s869 = smul.addr %s30, 2
          %s870 = sadd.s32 %s31, %s869
          %s871 = smul.addr %s870, 64
          %s872 = scalar_lea.hbm %s9, %s871
          %s874 = sshll.u32 %s862, 4
          %s875 = int_to_ptr.vmem [resolvable:$true] %s874
          %877 = dma.vmem_to_hbm [thread:$0]  %s875, 64, %s872, %s859
        $region64: #{tpu_custom_call.1} parent=55 // pred_fallthru
          _
      $region56: #{tpu_custom_call.1} parent=5 // pred_fallthru
        _
      %p878 = scmp.le.s32.totalorder 2, %s21
      // Predicated region
      $region65: #{tpu_custom_call.1} parent=5 // pred_check
        %p879 = pneg %p878
      $region66: #{tpu_custom_call.1} parent=5 // pred_check_branch
        %881 = sbr.rel (%p879) target = $region68
      $region67: #{tpu_custom_call.1} parent=5 // pred_region
        %s882 = ssub.s32 %s21, 2
        // Predicated region
        $region69: #{tpu_custom_call.1} parent=67 // pred_check
          %p883 = pneg %p270
        $region70: #{tpu_custom_call.1} parent=67 // pred_check_branch
          %885 = sbr.rel (%p883) target = $region72
        $region71: #{tpu_custom_call.1} parent=67 // pred_region
          %s886 = sand.u32 %s255, 1
          %s887 = scalar_lea.sflag [#allocation4], %s886
          %s888 = sand.u32 %s255, 1
          %s889 = smul.addr %s888, 4
          %s890 = scalar_lea.vmem [#allocation5], %s889
          %891 = dma.done %s887, 64
        $region72: #{tpu_custom_call.1} parent=67 // pred_fallthru
          _
      $region68: #{tpu_custom_call.1} parent=5 // pred_fallthru
        _
    $region6: #{tpu_custom_call.1} parent=1 // loop_footer
      %s25 = sadd.s32 1, %s21
    $region7: #{tpu_custom_call.1} parent=1 // loop_footer_branch
      %20 = sbr.rel target = $region3
    $region8: #{tpu_custom_call.1} parent=1 // loop_exit
      _
    %892 = vsyncpa [#allocation3], 1
    %s893 = scalar_lea.sflag [#allocation3], 1
    %894 = vsyncpa %s893, 1
    %895 = vsyncpa [#allocation4], 1
    %s896 = scalar_lea.sflag [#allocation4], 1
    %897 = vsyncpa %s896, 1

</llo_original>
